<compile_context>
chip_gen: v6e
topology: v6e:2x2x1
jax: 0.10.0
libtpu: 0.0.40
codegen_flags: <defaults>
</compile_context>

<pallas_src>
import math

import jax
import jax.numpy as jnp
from jax import lax
from jax.experimental import pallas as pl
from jax.experimental.pallas import tpu as pltpu


# --------------------------------------------------------------------------
# Kernels
# --------------------------------------------------------------------------
def _qkv_proj_kernel(x_ref, w_ref, o_ref):
    # x_ref: (tm, E), w_ref: (E, 3E) -> o_ref: (tm, 3E)
    o_ref[...] = jnp.dot(
        x_ref[...], w_ref[...], preferred_element_type=jnp.float32
    ).astype(o_ref.dtype)


def _flash_attn_kernel(q_ref, k_ref, v_ref, o_ref, m_ref, l_ref, acc_ref):
    # q_ref: (tq, E)   k_ref/v_ref: (tk, E)   o_ref: (tq, E)
    # m_ref/l_ref: (tq, 1) f32   acc_ref: (tq, E) f32
    kv = pl.program_id(2)

    @pl.when(kv == 0)
    def _init():
        m_ref[...] = jnp.full(m_ref.shape, -jnp.inf, dtype=m_ref.dtype)
        l_ref[...] = jnp.zeros(l_ref.shape, dtype=l_ref.dtype)
        acc_ref[...] = jnp.zeros(acc_ref.shape, dtype=acc_ref.dtype)

    q = q_ref[...]  # scale is pre-folded into Wq; native dtype for the MXU
    k = k_ref[...]
    v = v_ref[...]

    # s = q @ k^T without materializing k.T (contract last dims).
    s = lax.dot_general(
        q, k, (((1,), (1,)), ((), ())), preferred_element_type=jnp.float32
    )  # (tq, tk) f32

    m_prev = m_ref[...]
    m_new = jnp.maximum(m_prev, jnp.max(s, axis=-1, keepdims=True))
    alpha = jnp.exp(m_prev - m_new)
    p = jnp.exp(s - m_new)  # (tq, tk) f32

    l_ref[...] = alpha * l_ref[...] + jnp.sum(p, axis=-1, keepdims=True)
    acc_ref[...] = alpha * acc_ref[...] + jnp.dot(
        p.astype(v.dtype), v, preferred_element_type=jnp.float32
    )
    m_ref[...] = m_new

    @pl.when(kv == pl.num_programs(2) - 1)
    def _finalize():
        inv_l = pl.reciprocal(l_ref[...], approx=True)  # EUP slot
        o_ref[...] = (acc_ref[...] * inv_l).astype(o_ref.dtype)


# --------------------------------------------------------------------------
# Helpers
# --------------------------------------------------------------------------
def _pick_block(n, target=256):
    """Largest sublane-friendly tile <= target that evenly divides n."""
    if n <= target:
        return n
    for b in (target, 128, 64, 32, 16, 8):
        if n % b == 0:
            return b
    return n


def _vmem_limit(tile_bytes):
    # 2x the working set plus headroom, clamped to a range valid on every
    # generation (v7x has only 64 MiB physical VMEM).
    return int(min(max(2 * tile_bytes + (4 << 20), 16 << 20), 64 << 20))


# --------------------------------------------------------------------------
# Wrapper
# --------------------------------------------------------------------------
def self_attention(x, wq_t, wk_t, wv_t):
    """x: (B, S, E); wq_t/wk_t/wv_t: (E, E) = W.T of the torch Linear."""
    B, S, E = x.shape
    dtype = x.dtype
    itemsize = jnp.dtype(dtype).itemsize
    scale = 1.0 / math.sqrt(E)

    # Fold the 1/sqrt(E) scale into Wq (zero runtime cost) and fuse the three
    # projections into a single (E, 3E) weight -> one wide MXU pass.
    wqkv = jnp.concatenate([wq_t * scale, wk_t, wv_t], axis=1).astype(dtype)

    # ---------------- pass 1: fused QKV projection -------------------------
    # Flatten (B, S) so the projection runs as one lane-dense (B*S, 3E) slab.
    x2d = x.reshape(B * S, E)
    tm = _pick_block(B * S, 256)
    n_m = (B * S) // tm

    proj_bytes = 2 * (tm * E + E * 3 * E + tm * 3 * E) * itemsize
    qkv = pl.pallas_call(
        _qkv_proj_kernel,
        out_shape=jax.ShapeDtypeStruct((B * S, 3 * E), dtype),
        grid_spec=pltpu.PrefetchScalarGridSpec(
            num_scalar_prefetch=0,
            grid=(n_m,),
            in_specs=[
                pl.BlockSpec((tm, E), lambda i: (i, 0)),
                # Constant index_map: the weight block never changes, so the
                # pipeline does not re-DMA it across grid steps.
                pl.BlockSpec((E, 3 * E), lambda i: (0, 0)),
            ],
            out_specs=pl.BlockSpec((tm, 3 * E), lambda i: (i, 0)),
        ),
        compiler_params=pltpu.CompilerParams(
            dimension_semantics=("parallel",),
            vmem_limit_bytes=_vmem_limit(proj_bytes),
        ),
    )(x2d, wqkv)

    q = qkv[:, :E].reshape(B, S, E)
    k = qkv[:, E : 2 * E].reshape(B, S, E)
    v = qkv[:, 2 * E :].reshape(B, S, E)

    # ---------------- pass 2: flash attention ------------------------------
    tq = _pick_block(S, 256)
    tk = _pick_block(S, 256)
    n_q = S // tq
    n_kv = S // tk

    flash_bytes = (
        2 * (tq * E + 2 * tk * E + tq * E) * itemsize  # double-buffered blocks
        + (2 * tq + tq * E) * 4                        # f32 scratch
    )
    out = pl.pallas_call(
        _flash_attn_kernel,
        out_shape=jax.ShapeDtypeStruct((B, S, E), dtype),
        grid_spec=pltpu.PrefetchScalarGridSpec(
            num_scalar_prefetch=0,
            grid=(B, n_q, n_kv),
            in_specs=[
                pl.BlockSpec((None, tq, E), lambda b, qi, ki: (b, qi, 0)),
                pl.BlockSpec((None, tk, E), lambda b, qi, ki: (b, ki, 0)),
                pl.BlockSpec((None, tk, E), lambda b, qi, ki: (b, ki, 0)),
            ],
            out_specs=pl.BlockSpec((None, tq, E), lambda b, qi, ki: (b, qi, 0)),
            scratch_shapes=[
                pltpu.VMEM((tq, 1), jnp.float32),  # running max m
                pltpu.VMEM((tq, 1), jnp.float32),  # running sum l
                pltpu.VMEM((tq, E), jnp.float32),  # output accumulator
            ],
        ),
        compiler_params=pltpu.CompilerParams(
            dimension_semantics=("parallel", "parallel", "arbitrary"),
            vmem_limit_bytes=_vmem_limit(flash_bytes),
        ),
    )(q, k, v)
    return out


# --------------------------------------------------------------------------
# Pure-JAX reference (matches the PyTorch forward)
# --------------------------------------------------------------------------
def _reference(x, wq_t, wk_t, wv_t):
    E = x.shape[-1]
    q = x @ wq_t
    k = x @ wk_t
    v = x @ wv_t
    s = jnp.einsum("bqe,bke->bqk", q, k) / math.sqrt(E)
    p = jax.nn.softmax(s, axis=2)
    return jnp.einsum("bqk,bke->bqe", p, v)


if __name__ == "__main__":
    B, S, E = 2, 8, 32  # batch, seq, embed_dim

    key = jax.random.PRNGKey(0)
    kx, kq, kk, kv = jax.random.split(key, 4)

    x = jax.random.normal(kx, (B, S, E), dtype=jnp.float32)
    # Deterministic init of the three (E, E) Linear weights (no bias),
    # stored transposed so the kernel computes x @ W.T like nn.Linear.
    bound = 1.0 / math.sqrt(E)
    wq_t = jax.random.uniform(kq, (E, E), jnp.float32, -bound, bound)
    wk_t = jax.random.uniform(kk, (E, E), jnp.float32, -bound, bound)
    wv_t = jax.random.uniform(kv, (E, E), jnp.float32, -bound, bound)

    out = jax.block_until_ready(self_attention(x, wq_t, wk_t, wv_t))

    ref = _reference(x, wq_t, wk_t, wv_t)
    assert out.shape == (B, S, E)
    # Tolerance loosened slightly for the approx (EUP) reciprocal in softmax.
    assert jnp.allclose(out, ref, atol=2e-3, rtol=2e-3), "mismatch vs reference"

    print("KERNEL_OK")
</pallas_src>

<mosaic_0001>
module attributes {stable_mosaic.version = 11 : i64} {
  func.func @_qkv_proj_kernel(%arg0: i32, %arg1: memref<16x32xf32, #tpu.memory_space<vmem>>, %arg2: memref<32x96xf32, #tpu.memory_space<vmem>>, %arg3: memref<16x96xf32, #tpu.memory_space<vmem>>) attributes {dimension_semantics = [#tpu.dimension_semantics<parallel>], iteration_bounds = array<i64: 1>, scalar_prefetch = 0 : i64, scratch_operands = 0 : i64, tpu.core_type = #tpu.core_type<tc>, window_params = [{transform_indices = @transform_0, window_bounds = array<i64: 16, 32>}, {pipeline_mode = #tpu.pipeline_mode<synchronous>, transform_indices = @transform_1, window_bounds = array<i64: 32, 96>}, {transform_indices = @transform_2, window_bounds = array<i64: 16, 96>}]} {
    %c0 = arith.constant 0 : index
    %c0_0 = arith.constant 0 : index
    %0 = vector.load %arg1[%c0, %c0_0] : memref<16x32xf32, #tpu.memory_space<vmem>>, vector<16x32xf32>
    %c0_1 = arith.constant 0 : index
    %c0_2 = arith.constant 0 : index
    %1 = vector.load %arg2[%c0_1, %c0_2] : memref<32x96xf32, #tpu.memory_space<vmem>>, vector<32x96xf32>
    %cst = arith.constant dense<0.000000e+00> : vector<16x96xf32>
    %2 = tpu.matmul %0, %1, %cst {dimension_numbers = #tpu.dot_dimension_numbers<[1], [0], [0], [1], [0, 0, 1, 1], [], []>} : vector<16x32xf32>, vector<32x96xf32>, vector<16x96xf32> -> vector<16x96xf32>
    %c0_3 = arith.constant 0 : index
    %c0_4 = arith.constant 0 : index
    %3 = vector.load %arg3[%c0_3, %c0_4] : memref<16x96xf32, #tpu.memory_space<vmem>>, vector<16x96xf32>
    tpu.vector_store %arg3[%c0_3, %c0_4], %2 {strides = array<i32>} : memref<16x96xf32, #tpu.memory_space<vmem>>, vector<16x96xf32>,
    return
  }
  func.func @transform_0(%arg0: i32) -> (i32, i32) {
    %c0_i32 = arith.constant 0 : i32
    %c0_i32_0 = arith.constant 0 : i32
    return %arg0, %c0_i32 : i32, i32
  }
  func.func @transform_1(%arg0: i32) -> (i32, i32) {
    %c0_i32 = arith.constant 0 : i32
    %c0_i32_0 = arith.constant 0 : i32
    %c0_i32_1 = arith.constant 0 : i32
    return %c0_i32, %c0_i32_0 : i32, i32
  }
  func.func @transform_2(%arg0: i32) -> (i32, i32) {
    %c0_i32 = arith.constant 0 : i32
    %c0_i32_0 = arith.constant 0 : i32
    return %arg0, %c0_i32 : i32, i32
  }
}

</mosaic_0001>

<llo_original>
// kernel: tpu_custom_call.1
$region0: #{tpu_custom_call.1}
  #allocation0 [shape = 'u32[]', space=smem, size = 0x4, offset = 0x4, fixed_abs, tag = 'smem constant byte address 0x4 - core index']
  #allocation1 [shape = 'u32[144,128]{1,0:T(1,128)}', space=vmem, size = 0x12000, scoped, tag = 'internal scratch']
  %s0 = inlined_call_operand.hbm [shape: f32[16,32], index: 0, kind: input, shape index: {}]
  %s1 = inlined_call_operand.hbm [shape: f32[32,96], index: 1, kind: input, shape index: {}]
  %s2 = inlined_call_operand.hbm [shape: f32[16,96], index: 2, kind: output, shape index: {}]
  %s3 = sld [smem:[#allocation0]]
  $region26: #{tpu_custom_call.1} parent=0
    _
  %s5 = ssub.s32 1, %s3
  %s6 = scalar_select 0, %s5, %s3
  $region1: #{tpu_custom_call.1} parent=0
    #allocation2 [shape = 'u8[8192]{0}', space=vmem, size = 0x2000, scoped, tag = 'input window, operand 0, single buffered']
    #allocation3 [shape = 's32[1]{0}', space=sflag, size = 0x4, scoped, tag = 'scoped memory for tpu_custom_call.1']
    #allocation4 [shape = 's32[1]{0}', space=sflag, size = 0x4, scoped, tag = 'scoped memory for tpu_custom_call.1']
    #allocation5 [shape = 'u8[16384]{0}', space=vmem, size = 0x4000, scoped, tag = 'input window, operand 1, single buffered']
    #allocation6 [shape = 's32[1]{0}', space=sflag, size = 0x4, scoped, tag = 'scoped memory for tpu_custom_call.1']
    #allocation7 [shape = 'u8[8192]{0}', space=vmem, size = 0x2000, scoped, tag = 'output window, operand 0, single buffered']
    %7 = vsyncpa [#allocation3], 0
    %8 = vsyncpa [#allocation6], 0
    %9 = vsyncpa [#allocation4], 0
    // Predicated region
    $region2: #{tpu_custom_call.1} parent=1 // pred_check
      _
    $region3: #{tpu_custom_call.1} parent=1 // pred_check_branch
      %11 = sbr.rel (0) target = $region5
    $region4: #{tpu_custom_call.1} parent=1 // pred_region
      %s13 = ssub.s32 256, 256
      %14 = vsyncadd [#allocation3], %s13
      %s15 = sshll.u32 [#allocation2], 4
      %s16 = int_to_ptr.vmem [resolvable:$true] %s15
      %21 = dma.hbm_to_vmem [thread:$0]  %s0, 256, %s16, [#allocation3], 128, 128, 8
    $region5: #{tpu_custom_call.1} parent=1 // pred_fallthru
      _
    // Predicated region
    $region6: #{tpu_custom_call.1} parent=1 // pred_check
      _
    $region7: #{tpu_custom_call.1} parent=1 // pred_check_branch
      %23 = sbr.rel (0) target = $region9
    $region8: #{tpu_custom_call.1} parent=1 // pred_region
      %s25 = ssub.s32 512, 512
      %26 = vsyncadd [#allocation6], %s25
      %s27 = sshll.u32 [#allocation5], 4
      %s28 = int_to_ptr.vmem [resolvable:$true] %s27
      %33 = dma.hbm_to_vmem [thread:$0]  %s1, 512, %s28, [#allocation6], 128, 128, 8
    $region9: #{tpu_custom_call.1} parent=1 // pred_fallthru
      _
    // Predicated region
    $region10: #{tpu_custom_call.1} parent=1 // pred_check
      _
    $region11: #{tpu_custom_call.1} parent=1 // pred_check_branch
      %35 = sbr.rel (0) target = $region13
    $region12: #{tpu_custom_call.1} parent=1 // pred_region
      %36 = dma.done [#allocation3], 256
    $region13: #{tpu_custom_call.1} parent=1 // pred_fallthru
      _
    // Predicated region
    $region14: #{tpu_custom_call.1} parent=1 // pred_check
      _
    $region15: #{tpu_custom_call.1} parent=1 // pred_check_branch
      %38 = sbr.rel (0) target = $region17
    $region16: #{tpu_custom_call.1} parent=1 // pred_region
      %39 = dma.done [#allocation6], 512
    $region17: #{tpu_custom_call.1} parent=1 // pred_fallthru
      _
    %v40 = vld [vmem:[#allocation2] sm:$0xff]
    %v41 = vld [vmem:[#allocation2 + $0x8] sm:$0xff]
    %v42 = vld [vmem:[#allocation5] sm:$0xff]
    %v43 = vld [vmem:[#allocation5 + $0x8] sm:$0xff]
    %v44 = vld [vmem:[#allocation5 + $0x10] sm:$0xff]
    %v45 = vld [vmem:[#allocation5 + $0x18] sm:$0xff]
    %vm46 = vcmask 261120
    %v48 = vsel %vm46, %v40, 0
    %v51 = vsel %vm46, %v41, 0
    %53 = vmatprep.subr.mxu0 0.0
    %54 = vmatpush1.msra.mxu0 0.0
    %55 = vmatprep.subr.mxu0 0.0
    %56 = vmatpush1.msra.mxu0 0.0
    %57 = vmatprep.subr.mxu0 0.0
    %58 = vmatpush1.msra.mxu0 0.0
    %59 = vmatprep.subr.mxu0 0.0
    %60 = vmatpush1.msra.mxu0 0.0
    %61 = vmatprep.subr.mxu0 0.0
    %62 = vmatpush1.msra.mxu0 0.0
    %63 = vmatprep.subr.mxu0 0.0
    %64 = vmatpush1.msra.mxu0 0.0
    %65 = vmatprep.subr.mxu0 0.0
    %66 = vmatpush1.msra.mxu0 0.0
    %67 = vmatprep.subr.mxu0 0.0
    %68 = vmatpush1.msra.mxu0 0.0
    %69 = vmatprep.subr.mxu0 0.0
    %70 = vmatpush1.msra.mxu0 0.0
    %71 = vmatprep.subr.mxu0 0.0
    %72 = vmatpush1.msra.mxu0 0.0
    %73 = vmatprep.subr.mxu0 0.0
    %74 = vmatpush1.msra.mxu0 0.0
    %75 = vmatprep.subr.mxu0 0.0
    %76 = vmatpush1.msra.mxu0 0.0
    %77 = vmatprep.subr.mxu0 0.0
    %78 = vmatpush1.msra.mxu0 %v45
    %79 = vmatprep.subr.mxu0 0.0
    %80 = vmatpush1.msra.mxu0 %v44
    %81 = vmatprep.subr.mxu0 0.0
    %82 = vmatpush1.msra.mxu0 %v43
    %83 = vmatprep.subr.mxu0 0.0
    %84 = vmatpush1.msra.mxu0 %v42
    %85 = vmatprep.subr.mxu0 0.0
    %86 = vmatpush2.msra.mxu0 0.0
    %87 = vmatprep.subr.mxu0 0.0
    %88 = vmatpush2.msra.mxu0 0.0
    %89 = vmatprep.subr.mxu0 0.0
    %90 = vmatpush2.msra.mxu0 0.0
    %91 = vmatprep.subr.mxu0 0.0
    %92 = vmatpush2.msra.mxu0 0.0
    %93 = vmatprep.subr.mxu0 0.0
    %94 = vmatpush2.msra.mxu0 0.0
    %95 = vmatprep.subr.mxu0 0.0
    %96 = vmatpush2.msra.mxu0 0.0
    %97 = vmatprep.subr.mxu0 0.0
    %98 = vmatpush2.msra.mxu0 0.0
    %99 = vmatprep.subr.mxu0 0.0
    %100 = vmatpush2.msra.mxu0 0.0
    %101 = vmatprep.subr.mxu0 0.0
    %102 = vmatpush2.msra.mxu0 0.0
    %103 = vmatprep.subr.mxu0 0.0
    %104 = vmatpush2.msra.mxu0 0.0
    %105 = vmatprep.subr.mxu0 0.0
    %106 = vmatpush2.msra.mxu0 0.0
    %107 = vmatprep.subr.mxu0 0.0
    %108 = vmatpush2.msra.mxu0 0.0
    %109 = vmatprep.subr.mxu0 0.0
    %110 = vmatpush2.msra.mxu0 0.0
    %111 = vmatprep.subr.mxu0 0.0
    %112 = vmatpush2.msra.mxu0 0.0
    %113 = vmatprep.subr.mxu0 0.0
    %114 = vmatpush2.msra.mxu0 0.0
    %115 = vmatprep.subr.mxu0 0.0
    %116 = vmatpush2.msra.mxu0 0.0
    %117 = vmatprep.mubr.f32.mxu0 0.0
    %118 = vmatmul.mubr.f32.gmra.mxu0 %v48
    %v119 = vpop.f32.mrf.mxu0
    %v120 = vadd.f32 0.0, %v119
    %v121 = vpop.f32.mrf.mxu0
    %122 = vmatprep.mubr.f32.mxu0 0.0
    %123 = vmatmul.mubr.f32.gmra.mxu0 %v51
    %v124 = vpop.f32.mrf.mxu0
    %v125 = vadd.f32 0.0, %v124
    %v126 = vpop.f32.mrf.mxu0
    %127 = vdwg.mxu0
    %vm128 = vcmask 785408
    %129 = vst.msk [vmem:[#allocation7] sm:$0xff] %vm128, %v120
    %130 = vst.msk [vmem:[#allocation7 + $0x8] sm:$0xff] %vm128, %v125
    // Predicated region
    $region18: #{tpu_custom_call.1} parent=1 // pred_check
      _
    $region19: #{tpu_custom_call.1} parent=1 // pred_check_branch
      %132 = sbr.rel (0) target = $region21
    $region20: #{tpu_custom_call.1} parent=1 // pred_region
      %s134 = ssub.s32 256, 256
      %135 = vsyncadd [#allocation4], %s134
      %s136 = sshll.u32 [#allocation7], 4
      %s137 = int_to_ptr.vmem [resolvable:$true] %s136
      %142 = dma.vmem_to_hbm [thread:$0]  %s137, 256, %s2, [#allocation4], 128, 128, 8
    $region21: #{tpu_custom_call.1} parent=1 // pred_fallthru
      _
    // Predicated region
    $region22: #{tpu_custom_call.1} parent=1 // pred_check
      _
    $region23: #{tpu_custom_call.1} parent=1 // pred_check_branch
      %144 = sbr.rel (0) target = $region25
    $region24: #{tpu_custom_call.1} parent=1 // pred_region
      %145 = dma.done [#allocation4], 256
    $region25: #{tpu_custom_call.1} parent=1 // pred_fallthru
      _
    %146 = vsyncpa [#allocation3], 1
    %147 = vsyncpa [#allocation6], 1
    %148 = vsyncpa [#allocation4], 1

</llo_original>
